<compile_context>
chip_gen: v5e
topology: v5e:2x2
jax: 0.10.0
libtpu: 0.0.40
codegen_flags: <defaults>
</compile_context>

<pallas_src>
import math

import jax
import jax.numpy as jnp
from jax import lax
from jax.experimental import pallas as pl
from jax.experimental.pallas import tpu as pltpu


def _make_rope_kernel(dim: int, base: float):
    half = dim // 2
    # inv_freq[h] = exp(-2h * ln(base) / dim)
    coeff = -2.0 * math.log(base) / dim
    # If the half-table offsets (0, half) are 128-lane aligned, two unmasked
    # stores of the half-table are optimal.  Otherwise duplicate inv_freq
    # across the full lane width so each output is one full-width store.
    lane_dense = (half % 128) != 0
    half_is_pow2 = (half & (half - 1)) == 0

    def kernel(pos_ref, cos_ref, sin_ref):
        # pos_ref: (tN, 1) int32 ; cos_ref / sin_ref: (tN, dim) x.dtype
        pos = pos_ref[...].astype(jnp.float32)                        # (tN, 1)

        if lane_dense:
            h = lax.broadcasted_iota(jnp.int32, (1, dim), 1)
            h = (h & (half - 1)) if half_is_pow2 else (h % half)
            inv_freq = jnp.exp(h.astype(jnp.float32) * coeff)         # (1, dim)
            freqs = pos * inv_freq                                    # (tN, dim)
            # Full-width unmasked stores; emb = [freqs, freqs] is already
            # baked into the duplicated inv_freq.
            cos_ref[...] = jnp.cos(freqs).astype(cos_ref.dtype)
            sin_ref[...] = jnp.sin(freqs).astype(sin_ref.dtype)
        else:
            h = lax.broadcasted_iota(jnp.int32, (1, half), 1).astype(jnp.float32)
            inv_freq = jnp.exp(h * coeff)                             # (1, half)
            freqs = pos * inv_freq                                    # (tN, half)
            # Both store offsets (0, half) are multiples of 128 -> unmasked.
            c = jnp.cos(freqs).astype(cos_ref.dtype)
            cos_ref[:, :half] = c
            cos_ref[:, half:] = c
            s = jnp.sin(freqs).astype(sin_ref.dtype)
            sin_ref[:, :half] = s
            sin_ref[:, half:] = s

    return kernel


def _pick_row_tile(N: int, dim: int, out_bytes: int,
                   vmem_budget_bytes: int = 24 << 20, cap: int = 4096) -> int:
    """Largest row tile s.t. buffers + intermediates fit the VMEM budget."""
    half = dim // 2
    table_w = dim if (half % 128) != 0 else half     # intermediate table width
    per_row = (
        4 * dim * max(1, out_bytes)        # 2 outputs x 2 pipeline buffers
        + 2 * 128 * 4                      # lane-padded (tN, 1) pos x 2 buffers
        + 4 * table_w                      # f32 freqs intermediate
        + 2 * max(1, out_bytes) * table_w  # cast cos/sin intermediates
    )
    t = min(N, cap, max(8, vmem_budget_bytes // per_row))
    if t < N:
        t = max(8, (t // 8) * 8)
    # Guarantee >= 2 parallel grid steps when possible so both v7x TensorCores
    # get work (no effect on single-TC v5e/v6e beyond pipelining).
    if t >= N and N >= 16:
        t = (((N + 1) // 2 + 7) // 8) * 8
    return t


def recurrent_gemma_rotary_embedding(x, position_ids, dim, base=10000.0,
                                     row_tile=None):
    """Returns (cos, sin), each of shape (B, S, dim) and dtype x.dtype."""
    assert dim % 2 == 0, "rotary dim must be even"
    B, S = position_ids.shape
    N = B * S
    out_dtype = x.dtype
    itemsize = jnp.dtype(out_dtype).itemsize
    t_n = _pick_row_tile(N, dim, itemsize) if row_tile is None else row_tile
    grid = (pl.cdiv(N, t_n),)

    # Free reshape: flatten (B, S) and put positions on the sublane axis.
    pos2 = position_ids.astype(jnp.int32).reshape(N, 1)

    cost = pl.CostEstimate(
        flops=N * dim,                                 # broadcast multiply
        transcendentals=2 * N * dim,                   # cos + sin
        bytes_accessed=2 * N * dim * itemsize + N * 4, # outputs + positions
    )

    # TODO(synk): for dim < 128 the output stores only use dim/128 of the lane
    # width; a half-width table or fusion into the rotary-apply kernel would
    # reduce the HBM writeback but changes the module's output contract.
    cos, sin = pl.pallas_call(
        _make_rope_kernel(dim, float(base)),
        out_shape=(
            jax.ShapeDtypeStruct((N, dim), out_dtype),
            jax.ShapeDtypeStruct((N, dim), out_dtype),
        ),
        grid_spec=pltpu.PrefetchScalarGridSpec(
            num_scalar_prefetch=0,
            grid=grid,
            in_specs=[
                pl.BlockSpec((t_n, 1), lambda i: (i, 0)),
            ],
            out_specs=[
                pl.BlockSpec((t_n, dim), lambda i: (i, 0)),
                pl.BlockSpec((t_n, dim), lambda i: (i, 0)),
            ],
        ),
        compiler_params=pltpu.CompilerParams(
            dimension_semantics=("parallel",),
            vmem_limit_bytes=32 << 20,
        ),
        cost_estimate=cost,
    )(pos2)
    return cos.reshape(B, S, dim), sin.reshape(B, S, dim)


def _reference(x, position_ids, dim, base=10000.0):
    inv_freq = 1.0 / (base ** (jnp.arange(0, dim, 2, dtype=jnp.float32) / dim))
    freqs = position_ids.astype(jnp.float32)[:, :, None] * inv_freq[None, None, :]
    emb = jnp.concatenate([freqs, freqs], axis=-1)
    return jnp.cos(emb).astype(x.dtype), jnp.sin(emb).astype(x.dtype)


def _check(B, S, dim, dtype, row_tile=None, pos_offset_max=1000, seed=0):
    key = jax.random.PRNGKey(seed)
    kx, ko = jax.random.split(key)
    # x only contributes its dtype (and device) in the PyTorch module.
    x = jax.random.normal(kx, (B, S, dim), dtype=jnp.float32).astype(dtype)
    offs = jax.random.randint(ko, (B, 1), 0, pos_offset_max, dtype=jnp.int32)
    position_ids = offs + jnp.arange(S, dtype=jnp.int32)[None, :]

    cos, sin = recurrent_gemma_rotary_embedding(
        x, position_ids, dim, row_tile=row_tile)
    cos, sin = jax.block_until_ready((cos, sin))

    ref_cos, ref_sin = _reference(x, position_ids, dim)
    assert cos.shape == (B, S, dim) and sin.shape == (B, S, dim)
    assert cos.dtype == x.dtype and sin.dtype == x.dtype
    assert jnp.allclose(cos.astype(jnp.float32), ref_cos.astype(jnp.float32),
                        atol=2e-2, rtol=2e-2)
    assert jnp.allclose(sin.astype(jnp.float32), ref_sin.astype(jnp.float32),
                        atol=2e-2, rtol=2e-2)


if __name__ == "__main__":
    # Small shapes consistent with the module's forward.
    # Lane-dense (duplicated inv_freq) path: dim=32, half=16.
    _check(B=2, S=8, dim=32, dtype=jnp.bfloat16)
    # RecurrentGemma-like rotary dim (128) with a multi-tile flattened grid.
    _check(B=2, S=64, dim=128, dtype=jnp.bfloat16, row_tile=64)
    # Half-table path (half=128 is lane-aligned), single-step grid fallback.
    _check(B=1, S=16, dim=256, dtype=jnp.float32)
    print("KERNEL_OK")
</pallas_src>

<mosaic_0001>
module attributes {stable_mosaic.version = 11 : i64} {
  func.func @kernel(%arg0: i32, %arg1: memref<8x1xi32, #tpu.memory_space<vmem>>, %arg2: memref<8x32xbf16, #tpu.memory_space<vmem>>, %arg3: memref<8x32xbf16, #tpu.memory_space<vmem>>) attributes {dimension_semantics = [#tpu.dimension_semantics<parallel>], iteration_bounds = array<i64: 2>, scalar_prefetch = 0 : i64, scratch_operands = 0 : i64, tpu.core_type = #tpu.core_type<tc>, window_params = [{transform_indices = @transform_0, window_bounds = array<i64: 8, 1>}, {transform_indices = @transform_1, window_bounds = array<i64: 8, 32>}, {transform_indices = @transform_2, window_bounds = array<i64: 8, 32>}]} {
    %c0 = arith.constant 0 : index
    %c0_0 = arith.constant 0 : index
    %0 = vector.load %arg1[%c0, %c0_0] : memref<8x1xi32, #tpu.memory_space<vmem>>, vector<8x1xi32>
    %1 = arith.sitofp %0 : vector<8x1xi32> to vector<8x1xf32>
    %2 = tpu.iota {dimensions = array<i32: 1>} : vector<1x32xi32>
    %c15_i32 = arith.constant 15 : i32
    %3 = vector.broadcast %c15_i32 : i32 to vector<1x32xi32>
    %4 = arith.andi %2, %3 : vector<1x32xi32>
    %5 = arith.sitofp %4 : vector<1x32xi32> to vector<1x32xf32>
    %cst = arith.constant -0.575646281 : f32
    %6 = vector.broadcast %cst : f32 to vector<1x32xf32>
    %7 = arith.mulf %5, %6 : vector<1x32xf32>
    %8 = math.exp %7 : vector<1x32xf32>
    %9 = vector.broadcast %1 : vector<8x1xf32> to vector<8x32xf32>
    %10 = vector.broadcast %8 : vector<1x32xf32> to vector<8x32xf32>
    %11 = arith.mulf %9, %10 : vector<8x32xf32>
    %12 = math.cos %11 : vector<8x32xf32>
    %13 = arith.truncf %12 : vector<8x32xf32> to vector<8x32xbf16>
    %c0_1 = arith.constant 0 : index
    %c0_2 = arith.constant 0 : index
    %14 = vector.load %arg2[%c0_1, %c0_2] : memref<8x32xbf16, #tpu.memory_space<vmem>>, vector<8x32xbf16>
    tpu.vector_store %arg2[%c0_1, %c0_2], %13 {strides = array<i32>} : memref<8x32xbf16, #tpu.memory_space<vmem>>, vector<8x32xbf16>,
    %15 = math.sin %11 : vector<8x32xf32>
    %16 = arith.truncf %15 : vector<8x32xf32> to vector<8x32xbf16>
    %c0_3 = arith.constant 0 : index
    %c0_4 = arith.constant 0 : index
    %17 = vector.load %arg3[%c0_3, %c0_4] : memref<8x32xbf16, #tpu.memory_space<vmem>>, vector<8x32xbf16>
    tpu.vector_store %arg3[%c0_3, %c0_4], %16 {strides = array<i32>} : memref<8x32xbf16, #tpu.memory_space<vmem>>, vector<8x32xbf16>,
    return
  }
  func.func @transform_0(%arg0: i32) -> (i32, i32) {
    %c0_i32 = arith.constant 0 : i32
    %c0_i32_0 = arith.constant 0 : i32
    return %arg0, %c0_i32 : i32, i32
  }
  func.func @transform_1(%arg0: i32) -> (i32, i32) {
    %c0_i32 = arith.constant 0 : i32
    %c0_i32_0 = arith.constant 0 : i32
    return %arg0, %c0_i32 : i32, i32
  }
  func.func @transform_2(%arg0: i32) -> (i32, i32) {
    %c0_i32 = arith.constant 0 : i32
    %c0_i32_0 = arith.constant 0 : i32
    return %arg0, %c0_i32 : i32, i32
  }
}

</mosaic_0001>

<llo_original>
// kernel: tpu_custom_call.1
$region0: #{tpu_custom_call.1}
  #allocation0 [shape = 'u32[]', space=smem, size = 0x4, offset = 0x4, fixed_abs, tag = 'smem constant byte address 0x4 - core index']
  #allocation1 [shape = 'u32[72,128]{1,0:T(1,128)}', space=vmem, size = 0x9000, scoped, tag = 'internal scratch']
  %s0 = inlined_call_operand.vmem [shape: s32[16,1], index: 0, kind: input, shape index: {}]
  %s1 = inlined_call_operand.hbm [shape: bf16[16,32], index: 1, kind: output, shape index: {0}]
  %s2 = inlined_call_operand.hbm [shape: bf16[16,32], index: 2, kind: output, shape index: {1}]
  %3 = xla_tuple %s1, %s2
  %s4 = sld [smem:[#allocation0]]
  $region45: #{tpu_custom_call.1} parent=0
    _
  %s6 = ssub.s32 1, %s4
  %s7 = scalar_select 0, %s6, %s4
  $region1: #{tpu_custom_call.1} parent=0
    #allocation2 [shape = 'u8[4096]{0}', space=vmem, size = 0x1000, scoped, tag = 'output window, operand 0']
    #allocation3 [shape = 's32[2]{0}', space=sflag, size = 0x8, scoped, tag = 'scoped memory for tpu_custom_call.1']
    #allocation4 [shape = 'u8[4096]{0}', space=vmem, size = 0x1000, scoped, tag = 'output window, operand 1']
    #allocation5 [shape = 's32[2]{0}', space=sflag, size = 0x8, scoped, tag = 'scoped memory for tpu_custom_call.1']
    %8 = vsyncpa [#allocation3], 0
    %s9 = scalar_lea.sflag [#allocation3], 1
    %10 = vsyncpa %s9, 0
    %11 = vsyncpa [#allocation5], 0
    %s12 = scalar_lea.sflag [#allocation5], 1
    %13 = vsyncpa %s12, 0
    loop: start=0, step=1, limit=4
    $region2: #{tpu_custom_call.1} parent=1 // loop_pre_header
      _
    $region3: #{tpu_custom_call.1} parent=1 // loop_header
      %s15 = sphi 0, %s19
      %p16 = scmp.ge.s32.totalorder %s15, 4
      %s25 = sphi 0, %s27
      %s28 = sphi 0, %s25
      %s29 = sphi 0, %s28
      %s45 = sphi 0, %s29
      %s51 = sphi 0, %s53
      %s54 = sphi 0, %s51
      %s55 = sphi 0, %s54
      %s71 = sphi 0, %s55
      %s77 = sphi 0, %s79
      %s80 = sphi 0, %s77
      %s81 = sphi 0, %s80
      %s97 = sphi 0, %s81
    $region4: #{tpu_custom_call.1} parent=1 // loop_header_branch
      %18 = sbr.rel (%p16) target = $region8
    $region5: #{tpu_custom_call.1} parent=1 // loop_body
      %s20 = ssub.s32 %s15, 1
      %s21 = ssub.s32 %s15, 2
      %s22 = sadd.s32 %s15, 1
      %s23 = ssub.s32 %s15, %s22
      %p24 = scmp.eq.s32.totalorder %s23, 0
      %s26 = sadd.s32 %s25, 1
      %s27 = scalar_select %p24, %s25, %s26
      %p30 = pneg %p24
      %p31 = scmp.eq.s32.totalorder %s15, 1
      %p32 = por %p30, %p31
      %p33 = scmp.ne.s32.totalorder %s25, %s28
      %p34 = scmp.eq.s32.totalorder %s15, 0
      %p35 = por %p33, %p34
      %p36 = scmp.ne.s32.totalorder %s25, %s28
      %p37 = scmp.eq.s32.totalorder %s20, 1
      %p38 = por %p36, %p37
      %p39 = scmp.ne.s32.totalorder %s28, %s29
      %p40 = scmp.eq.s32.totalorder %s20, 0
      %p41 = por %p39, %p40
      %p42 = scmp.ne.s32.totalorder %s28, %s29
      %p43 = scmp.eq.s32.totalorder %s21, 1
      %p44 = por %p42, %p43
      %p46 = scmp.ne.s32.totalorder %s29, %s45
      %p47 = scmp.eq.s32.totalorder %s21, 0
      %p48 = por %p46, %p47
      %s49 = ssub.s32 %s15, %s22
      %p50 = scmp.eq.s32.totalorder %s49, 0
      %s52 = sadd.s32 %s51, 1
      %s53 = scalar_select %p50, %s51, %s52
      %p56 = pneg %p50
      %p57 = scmp.eq.s32.totalorder %s15, 1
      %p58 = por %p56, %p57
      %p59 = scmp.ne.s32.totalorder %s51, %s54
      %p60 = scmp.eq.s32.totalorder %s15, 0
      %p61 = por %p59, %p60
      %p62 = scmp.ne.s32.totalorder %s51, %s54
      %p63 = scmp.eq.s32.totalorder %s20, 1
      %p64 = por %p62, %p63
      %p65 = scmp.ne.s32.totalorder %s54, %s55
      %p66 = scmp.eq.s32.totalorder %s20, 0
      %p67 = por %p65, %p66
      %p68 = scmp.ne.s32.totalorder %s54, %s55
      %p69 = scmp.eq.s32.totalorder %s21, 1
      %p70 = por %p68, %p69
      %p72 = scmp.ne.s32.totalorder %s55, %s71
      %p73 = scmp.eq.s32.totalorder %s21, 0
      %p74 = por %p72, %p73
      %s75 = ssub.s32 %s15, %s22
      %p76 = scmp.eq.s32.totalorder %s75, 0
      %s78 = sadd.s32 %s77, 1
      %s79 = scalar_select %p76, %s77, %s78
      %p82 = pneg %p76
      %p83 = scmp.eq.s32.totalorder %s15, 1
      %p84 = por %p82, %p83
      %p85 = scmp.ne.s32.totalorder %s77, %s80
      %p86 = scmp.eq.s32.totalorder %s15, 0
      %p87 = por %p85, %p86
      %p88 = scmp.ne.s32.totalorder %s77, %s80
      %p89 = scmp.eq.s32.totalorder %s20, 1
      %p90 = por %p88, %p89
      %p91 = scmp.ne.s32.totalorder %s80, %s81
      %p92 = scmp.eq.s32.totalorder %s20, 0
      %p93 = por %p91, %p92
      %p94 = scmp.ne.s32.totalorder %s80, %s81
      %p95 = scmp.eq.s32.totalorder %s21, 1
      %p96 = por %p94, %p95
      %p98 = scmp.ne.s32.totalorder %s81, %s97
      %p99 = scmp.eq.s32.totalorder %s21, 0
      %p100 = por %p98, %p99
      %p101 = scmp.le.s32.totalorder 1, %s15
      %p102 = scmp.lt.s32.totalorder %s15, 3
      %p103 = pnand %p101, %p102
      %p104 = pneg %p103
      // Predicated region
      $region9: #{tpu_custom_call.1} parent=5 // pred_check
        _
      $region10: #{tpu_custom_call.1} parent=5 // pred_check_branch
        %106 = sbr.rel (%p103) target = $region12
      $region11: #{tpu_custom_call.1} parent=5 // pred_region
        %s107 = ssub.s32 %s15, 1
      $region12: #{tpu_custom_call.1} parent=5 // pred_fallthru
        _
      %p108 = scmp.lt.s32.totalorder %s15, 2
      // Predicated region
      $region13: #{tpu_custom_call.1} parent=5 // pred_check
        %p109 = pneg %p108
      $region14: #{tpu_custom_call.1} parent=5 // pred_check_branch
        %111 = sbr.rel (%p109) target = $region16
      $region15: #{tpu_custom_call.1} parent=5 // pred_region
        // Predicated region
        $region17: #{tpu_custom_call.1} parent=15 // pred_check
          %p112 = pneg %p35
        $region18: #{tpu_custom_call.1} parent=15 // pred_check_branch
          %114 = sbr.rel (%p112) target = $region20
        $region19: #{tpu_custom_call.1} parent=15 // pred_region
          %p115 = scmp.lt.s32.totalorder %s15, 1
          %s116 = scalar_select %p115, %s15, 1
          %s117 = smul.addr %s116, 8
          %s118 = scalar_lea.vmem %s0, %s117
        $region20: #{tpu_custom_call.1} parent=15 // pred_fallthru
          _
      $region16: #{tpu_custom_call.1} parent=5 // pred_fallthru
        _
      %p119 = scmp.le.s32.totalorder 1, %s15
      %p120 = scmp.lt.s32.totalorder %s15, 3
      %p121 = pnand %p119, %p120
      %p122 = pneg %p121
      // Predicated region
      $region21: #{tpu_custom_call.1} parent=5 // pred_check
        _
      $region22: #{tpu_custom_call.1} parent=5 // pred_check_branch
        %124 = sbr.rel (%p121) target = $region24
      $region23: #{tpu_custom_call.1} parent=5 // pred_region
        %s125 = ssub.s32 %s15, 1
        %p126 = scmp.lt.s32.totalorder %s20, 1
        %s127 = scalar_select %p126, %s20, 1
        %s128 = smul.addr %s127, 8
        %s129 = scalar_lea.vmem %s0, %s128
        %p130 = pneg %p41
        %p131 = pneg %p38
        %p132 = pneg %p67
        %p133 = pneg %p64
        %s134 = sand.u32 %s54, 1
        %s135 = scalar_lea.sflag [#allocation3], %s134
        %s136 = sand.u32 %s54, 1
        %s137 = smul.addr %s136, 4
        %s138 = scalar_lea.vmem [#allocation2], %s137
        %p139 = pneg %p93
        %p140 = pneg %p90
        %s141 = sand.u32 %s80, 1
        %s142 = scalar_lea.sflag [#allocation5], %s141
        %s143 = sand.u32 %s80, 1
        %s144 = smul.addr %s143, 4
        %s145 = scalar_lea.vmem [#allocation4], %s144
        %p146 = scmp.lt.s32.totalorder %s20, 1
        %s147 = scalar_select %p146, %s20, 1
        %s148 = smul.addr %s147, 8
        %s149 = scalar_lea.vmem %s0, %s148
        %v150 = vld [vmem:[%s149] sm:$0xff]
        %v151 = vcvt.s32.f32 %v150
        %v152 = vlaneseq
        %v153 = vand.u32 %v152, 127
        %v154 = vand.u32 %v153, 15
        %v155 = vcvt.s32.f32 %v154
        %v156 = vmul.f32 %v155, -0.5756463
        %v157 = vmul.f32 %v156, 1.442695
        %v158 = vpow.pop %v157
        %160 = vset.pattern.permute.xlu0 0
        %161 = vperm.xlu0 %160, %v151
        %v162 = vpop.permute.xlu0 %161
        %v164 = vmul.f32 %v162, %v158
        %v165 = vand.u32 2147483647, %v164
        %vm166 = vcmp.le.f32.partialorder %v165, 0.7853982
        %vm167 = vcmp.lt.s32.totalorder %v164, 0
        %v168 = vand.u32 %v164, 2139095040
        %v169 = vshrl.u32 %v168, 23
        %v170 = vsub.s32 %v169, 127
        %v171 = vand.u32 2147483647, %v164
        %v172 = vand.u32 %v171, 8388607
        %v173 = vor.u32 %v172, 8388608
        %v174 = vsub.s32 0, %v173
        %v175 = vadd.s32 %v170, 1
        %vm176 = vcmp.gt.s32.totalorder %v175, 0
        %v177 = vsel %vm176, %v175, 0
        %v178 = vshrl.u32 %v177, 5
        %v179 = vand.u32 %v177, 31
        %v180 = vsub.s32 32, %v179
        %v181 = vshrl.u32 683565275, %v180
        %v182 = vshll.u32 683565275, %v179
        %v183 = vshrl.u32 2475754826, %v180
        %v184 = vor.u32 %v182, %v183
        %v185 = vshll.u32 2475754826, %v179
        %v186 = vshrl.u32 2131351028, %v180
        %v187 = vor.u32 %v185, %v186
        %v188 = vshll.u32 2131351028, %v179
        %v189 = vshrl.u32 2102212464, %v180
        %v190 = vor.u32 %v188, %v189
        %v191 = vshll.u32 2102212464, %v179
        %v192 = vshrl.u32 920167782, %v180
        %v193 = vor.u32 %v191, %v192
        %v194 = vshll.u32 920167782, %v179
        %v195 = vshrl.u32 1326507024, %v180
        %v196 = vor.u32 %v194, %v195
        %vm197 = vcmp.lt.s32.totalorder %v178, 1
        %vm198 = vcmp.lt.s32.totalorder %v178, 2
        %vm199 = vcmp.lt.s32.totalorder %v178, 3
        %vm200 = vcmp.lt.s32.totalorder %v178, 4
        %v201 = vsel %vm197, %v181, %v184
        %v202 = vsel %vm200, %v190, 2102212464
        %v203 = vsel %vm199, %v187, %v202
        %v204 = vsel %vm198, %v201, %v203
        %v205 = vsel %vm197, %v184, %v187
        %v206 = vsel %vm200, %v193, 920167782
        %v207 = vsel %vm199, %v190, %v206
        %v208 = vsel %vm198, %v205, %v207
        %v209 = vsel %vm197, %v187, %v190
        %v210 = vsel %vm200, %v196, 1326507024
        %v211 = vsel %vm199, %v193, %v210
        %v212 = vsel %vm198, %v209, %v211
        %v213 = vshll.u32 %v173, 8
        %v214 = vand.u32 %v213, 65535
        %v215 = vshrl.u32 %v213, 16
        %v216 = vand.u32 %v212, 65535
        %v217 = vshrl.u32 %v212, 16
        %v218 = vmul.u32 %v214, %v216
        %v219 = vmul.u32 %v214, %v217
        %v220 = vmul.u32 %v215, %v216
        %v221 = vmul.u32 %v215, %v217
        %v222 = vshll.u32 %v219, 16
        %v223 = vshrl.u32 %v219, 16
        %v224 = vshll.u32 %v220, 16
        %v225 = vshrl.u32 %v220, 16
        %vm226 = vc.u32 %v218, %v222
        %v227 = vsel %vm226, 1, 0
        %v228 = vadd.s32 %v218, %v222
        %v229 = vadd.s32 %v221, %v227
        %vm230 = vc.u32 %v228, %v224
        %v231 = vsel %vm230, 1, 0
        %v232 = vadd.s32 %v228, %v224
        %v233 = vadd.s32 %v229, %v231
        %v234 = vadd.s32 %v233, %v223
        %v235 = vadd.s32 %v234, %v225
        %v236 = vand.u32 %v213, 65535
        %v237 = vshrl.u32 %v213, 16
        %v238 = vand.u32 %v208, 65535
        %v239 = vshrl.u32 %v208, 16
        %v240 = vmul.u32 %v236, %v238
        %v241 = vmul.u32 %v236, %v239
        %v242 = vmul.u32 %v237, %v238
        %v243 = vmul.u32 %v237, %v239
        %v244 = vshll.u32 %v241, 16
        %v245 = vshrl.u32 %v241, 16
        %v246 = vshll.u32 %v242, 16
        %v247 = vshrl.u32 %v242, 16
        %vm248 = vc.u32 %v240, %v244
        %v249 = vsel %vm248, 1, 0
        %v250 = vadd.s32 %v240, %v244
        %v251 = vadd.s32 %v243, %v249
        %vm252 = vc.u32 %v250, %v246
        %v253 = vsel %vm252, 1, 0
        %v254 = vadd.s32 %v250, %v246
        %v255 = vadd.s32 %v251, %v253
        %v256 = vadd.s32 %v255, %v245
        %v257 = vadd.s32 %v256, %v247
        %v258 = vmul.u32 %v213, %v204
        %v259 = vadd.s32 %v235, %v254
        %vm260 = vc.u32 %v235, %v254
        %v261 = vadd.s32 %v257, 1
        %v262 = vsel %vm260, %v261, %v257
        %v263 = vadd.s32 %v258, %v262
        %v264 = vadd.s32 %v263, 536870912
        %v265 = vshrl.u32 %v264, 30
        %v266 = vshll.u32 %v265, 30
        %v267 = vsub.s32 %v263, %v266
        %vm268 = vcmp.lt.s32.totalorder %v267, 0
        %v269 = vsub.s32 0, %v267
        %v270 = vsel %vm268, %v269, %v267
        %v271 = vclz %v270
        %v272 = vsub.s32 %v271, 2
        %vm273 = vcmp.gt.s32.totalorder 0, %v272
        %v274 = vsel %vm273, 0, %v272
        %v275 = vsub.s32 32, %v274
        %v276 = vshll.u32 %v267, %v274
        %v277 = vshrl.u32 %v259, %v275
        %v278 = vor.u32 %v276, %v277
        %v279 = vsub.s32 4294967266, %v274
        %v280 = vadd.s32 %v279, 127
        %v281 = vshll.u32 %v280, 23
        %v282 = vor.u32 4788187, %v281
        %v283 = vand.u32 2147483647, %v282
        %v285 = vcvt.s32.f32 %v278
        %v286 = vmul.f32 %v285, %v283
        %v287 = vxor.u32 %v286, 2147483648
        %v288 = vsel %vm167, %v287, %v286
        %v289 = vsub.s32 4, %v265
        %v290 = vsel %vm167, %v289, %v265
        %v291 = vsel %vm166, %v164, %v288
        %v292 = vsel %vm166, 0, %v290
        %v293 = vmul.f32 %v291, %v291
        %v294 = vmul.f32 %v293, -0.001358992
        %v295 = vadd.f32 %v294, 0.041655596
        %v296 = vmul.f32 %v293, %v295
        %v297 = vadd.f32 %v296, -0.4999988
        %v298 = vmul.f32 %v293, %v297
        %v299 = vadd.f32 1.0, %v298
        %v300 = vmul.f32 %v291, %v291
        %v301 = vmul.f32 %v300, -0.00019511016
        %v302 = vadd.f32 %v301, 0.008332121
        %v303 = vmul.f32 %v300, %v302
        %v304 = vadd.f32 %v303, -0.16666654
        %v305 = vmul.f32 %v300, %v304
        %v306 = vadd.f32 %v305, 1.0
        %v307 = vmul.f32 %v306, %v291
        %vm308 = vweird.f32 %v164
        %v309 = vand.u32 %v292, 3
        %vm310 = vcmp.lt.s32.totalorder %v309, 2
        %vm311 = vcmp.eq.s32.totalorder %v309, 0
        %v312 = vxor.u32 %v307, 2147483648
        %v313 = vsel %vm311, %v299, %v312
        %vm314 = vcmp.eq.s32.totalorder %v309, 2
        %v315 = vxor.u32 %v299, 2147483648
        %v316 = vsel %vm314, %v315, %v307
        %v317 = vsel %vm310, %v313, %v316
        %v318 = vsel %vm308, nan, %v317
        %v319 = vpack.c.bf16 %v318, %v318
        %vm320 = vcmask 257024
        %321 = vst.msk [vmem:[%s138] sm:$0xf] %vm320, %v319
        %v322 = vand.u32 2147483647, %v164
        %vm323 = vcmp.le.f32.partialorder %v322, 0.7853982
        %vm324 = vcmp.lt.s32.totalorder %v164, 0
        %v325 = vand.u32 %v164, 2139095040
        %v326 = vshrl.u32 %v325, 23
        %v327 = vsub.s32 %v326, 127
        %v328 = vand.u32 2147483647, %v164
        %v329 = vand.u32 %v328, 8388607
        %v330 = vor.u32 %v329, 8388608
        %v331 = vsub.s32 0, %v330
        %v332 = vadd.s32 %v327, 1
        %vm333 = vcmp.gt.s32.totalorder %v332, 0
        %v334 = vsel %vm333, %v332, 0
        %v335 = vshrl.u32 %v334, 5
        %v336 = vand.u32 %v334, 31
        %v337 = vsub.s32 32, %v336
        %v338 = vshrl.u32 683565275, %v337
        %v339 = vshll.u32 683565275, %v336
        %v340 = vshrl.u32 2475754826, %v337
        %v341 = vor.u32 %v339, %v340
        %v342 = vshll.u32 2475754826, %v336
        %v343 = vshrl.u32 2131351028, %v337
        %v344 = vor.u32 %v342, %v343
        %v345 = vshll.u32 2131351028, %v336
        %v346 = vshrl.u32 2102212464, %v337
        %v347 = vor.u32 %v345, %v346
        %v348 = vshll.u32 2102212464, %v336
        %v349 = vshrl.u32 920167782, %v337
        %v350 = vor.u32 %v348, %v349
        %v351 = vshll.u32 920167782, %v336
        %v352 = vshrl.u32 1326507024, %v337
        %v353 = vor.u32 %v351, %v352
        %vm354 = vcmp.lt.s32.totalorder %v335, 1
        %vm355 = vcmp.lt.s32.totalorder %v335, 2
        %vm356 = vcmp.lt.s32.totalorder %v335, 3
        %vm357 = vcmp.lt.s32.totalorder %v335, 4
        %v358 = vsel %vm354, %v338, %v341
        %v359 = vsel %vm357, %v347, 2102212464
        %v360 = vsel %vm356, %v344, %v359
        %v361 = vsel %vm355, %v358, %v360
        %v362 = vsel %vm354, %v341, %v344
        %v363 = vsel %vm357, %v350, 920167782
        %v364 = vsel %vm356, %v347, %v363
        %v365 = vsel %vm355, %v362, %v364
        %v366 = vsel %vm354, %v344, %v347
        %v367 = vsel %vm357, %v353, 1326507024
        %v368 = vsel %vm356, %v350, %v367
        %v369 = vsel %vm355, %v366, %v368
        %v370 = vshll.u32 %v330, 8
        %v371 = vand.u32 %v370, 65535
        %v372 = vshrl.u32 %v370, 16
        %v373 = vand.u32 %v369, 65535
        %v374 = vshrl.u32 %v369, 16
        %v375 = vmul.u32 %v371, %v373
        %v376 = vmul.u32 %v371, %v374
        %v377 = vmul.u32 %v372, %v373
        %v378 = vmul.u32 %v372, %v374
        %v379 = vshll.u32 %v376, 16
        %v380 = vshrl.u32 %v376, 16
        %v381 = vshll.u32 %v377, 16
        %v382 = vshrl.u32 %v377, 16
        %vm383 = vc.u32 %v375, %v379
        %v384 = vsel %vm383, 1, 0
        %v385 = vadd.s32 %v375, %v379
        %v386 = vadd.s32 %v378, %v384
        %vm387 = vc.u32 %v385, %v381
        %v388 = vsel %vm387, 1, 0
        %v389 = vadd.s32 %v385, %v381
        %v390 = vadd.s32 %v386, %v388
        %v391 = vadd.s32 %v390, %v380
        %v392 = vadd.s32 %v391, %v382
        %v393 = vand.u32 %v370, 65535
        %v394 = vshrl.u32 %v370, 16
        %v395 = vand.u32 %v365, 65535
        %v396 = vshrl.u32 %v365, 16
        %v397 = vmul.u32 %v393, %v395
        %v398 = vmul.u32 %v393, %v396
        %v399 = vmul.u32 %v394, %v395
        %v400 = vmul.u32 %v394, %v396
        %v401 = vshll.u32 %v398, 16
        %v402 = vshrl.u32 %v398, 16
        %v403 = vshll.u32 %v399, 16
        %v404 = vshrl.u32 %v399, 16
        %vm405 = vc.u32 %v397, %v401
        %v406 = vsel %vm405, 1, 0
        %v407 = vadd.s32 %v397, %v401
        %v408 = vadd.s32 %v400, %v406
        %vm409 = vc.u32 %v407, %v403
        %v410 = vsel %vm409, 1, 0
        %v411 = vadd.s32 %v407, %v403
        %v412 = vadd.s32 %v408, %v410
        %v413 = vadd.s32 %v412, %v402
        %v414 = vadd.s32 %v413, %v404
        %v415 = vmul.u32 %v370, %v361
        %v416 = vadd.s32 %v392, %v411
        %vm417 = vc.u32 %v392, %v411
        %v418 = vadd.s32 %v414, 1
        %v419 = vsel %vm417, %v418, %v414
        %v420 = vadd.s32 %v415, %v419
        %v421 = vadd.s32 %v420, 536870912
        %v422 = vshrl.u32 %v421, 30
        %v423 = vshll.u32 %v422, 30
        %v424 = vsub.s32 %v420, %v423
        %vm425 = vcmp.lt.s32.totalorder %v424, 0
        %v426 = vsub.s32 0, %v424
        %v427 = vsel %vm425, %v426, %v424
        %v428 = vclz %v427
        %v429 = vsub.s32 %v428, 2
        %vm430 = vcmp.gt.s32.totalorder 0, %v429
        %v431 = vsel %vm430, 0, %v429
        %v432 = vsub.s32 32, %v431
        %v433 = vshll.u32 %v424, %v431
        %v434 = vshrl.u32 %v416, %v432
        %v435 = vor.u32 %v433, %v434
        %v436 = vsub.s32 4294967266, %v431
        %v437 = vadd.s32 %v436, 127
        %v438 = vshll.u32 %v437, 23
        %v439 = vor.u32 4788187, %v438
        %v440 = vand.u32 2147483647, %v439
        %v442 = vcvt.s32.f32 %v435
        %v443 = vmul.f32 %v442, %v440
        %v444 = vxor.u32 %v443, 2147483648
        %v445 = vsel %vm324, %v444, %v443
        %v446 = vsub.s32 4, %v422
        %v447 = vsel %vm324, %v446, %v422
        %v448 = vsel %vm323, %v164, %v445
        %v449 = vsel %vm323, 0, %v447
        %v450 = vmul.f32 %v448, %v448
        %v451 = vmul.f32 %v450, -0.001358992
        %v452 = vadd.f32 %v451, 0.041655596
        %v453 = vmul.f32 %v450, %v452
        %v454 = vadd.f32 %v453, -0.4999988
        %v455 = vmul.f32 %v450, %v454
        %v456 = vadd.f32 1.0, %v455
        %v457 = vmul.f32 %v448, %v448
        %v458 = vmul.f32 %v457, -0.00019511016
        %v459 = vadd.f32 %v458, 0.008332121
        %v460 = vmul.f32 %v457, %v459
        %v461 = vadd.f32 %v460, -0.16666654
        %v462 = vmul.f32 %v457, %v461
        %v463 = vadd.f32 %v462, 1.0
        %v464 = vmul.f32 %v463, %v448
        %vm465 = vweird.f32 %v164
        %v466 = vadd.s32 %v449, 3
        %v467 = vand.u32 %v466, 3
        %vm468 = vcmp.lt.s32.totalorder %v467, 2
        %vm469 = vcmp.eq.s32.totalorder %v467, 0
        %v470 = vxor.u32 %v464, 2147483648
        %v471 = vsel %vm469, %v456, %v470
        %vm472 = vcmp.eq.s32.totalorder %v467, 2
        %v473 = vxor.u32 %v456, 2147483648
        %v474 = vsel %vm472, %v473, %v464
        %v475 = vsel %vm468, %v471, %v474
        %v476 = vsel %vm465, nan, %v475
        %v477 = vpack.c.bf16 %v476, %v476
        %478 = vst.msk [vmem:[%s145] sm:$0xf] %vm320, %v477
        %s479 = sand.u32 %s54, 1
        %s480 = scalar_lea.sflag [#allocation3], %s479
        %s481 = sand.u32 %s54, 1
        %s482 = smul.addr %s481, 4
        %s483 = scalar_lea.vmem [#allocation2], %s482
        %s484 = sand.u32 %s80, 1
        %s485 = scalar_lea.sflag [#allocation5], %s484
        %s486 = sand.u32 %s80, 1
        %s487 = smul.addr %s486, 4
        %s488 = scalar_lea.vmem [#allocation4], %s487
        // Predicated region
        $region25: #{tpu_custom_call.1} parent=23 // pred_check
          %p489 = pneg %p64
        $region26: #{tpu_custom_call.1} parent=23 // pred_check_branch
          %491 = sbr.rel (%p489) target = $region28
        $region27: #{tpu_custom_call.1} parent=23 // pred_region
          %493 = vsyncadd %s480, 0
          %s494 = smul.addr %s20, 4
          %s495 = scalar_lea.hbm %s1, %s494
          %s497 = sshll.u32 %s483, 4
          %s498 = int_to_ptr.vmem [resolvable:$true] %s497
          %s499 = sshll.u32 %s495, 4
          %s500 = int_to_ptr.hbm [resolvable:$true] %s499
          %502 = dma.vmem_to_hbm [thread:$0]  %s498, 64, %s500, %s480
        $region28: #{tpu_custom_call.1} parent=23 // pred_fallthru
          _
        // Predicated region
        $region29: #{tpu_custom_call.1} parent=23 // pred_check
          %p503 = pneg %p90
        $region30: #{tpu_custom_call.1} parent=23 // pred_check_branch
          %505 = sbr.rel (%p503) target = $region32
        $region31: #{tpu_custom_call.1} parent=23 // pred_region
          %507 = vsyncadd %s485, 0
          %s508 = smul.addr %s20, 4
          %s509 = scalar_lea.hbm %s2, %s508
          %s511 = sshll.u32 %s488, 4
          %s512 = int_to_ptr.vmem [resolvable:$true] %s511
          %s513 = sshll.u32 %s509, 4
          %s514 = int_to_ptr.hbm [resolvable:$true] %s513
          %516 = dma.vmem_to_hbm [thread:$0]  %s512, 64, %s514, %s485
        $region32: #{tpu_custom_call.1} parent=23 // pred_fallthru
          _
      $region24: #{tpu_custom_call.1} parent=5 // pred_fallthru
        _
      %p517 = scmp.le.s32.totalorder 2, %s15
      // Predicated region
      $region33: #{tpu_custom_call.1} parent=5 // pred_check
        %p518 = pneg %p517
      $region34: #{tpu_custom_call.1} parent=5 // pred_check_branch
        %520 = sbr.rel (%p518) target = $region36
      $region35: #{tpu_custom_call.1} parent=5 // pred_region
        %s521 = ssub.s32 %s15, 2
        // Predicated region
        $region37: #{tpu_custom_call.1} parent=35 // pred_check
          %p522 = pneg %p70
        $region38: #{tpu_custom_call.1} parent=35 // pred_check_branch
          %524 = sbr.rel (%p522) target = $region40
        $region39: #{tpu_custom_call.1} parent=35 // pred_region
          %s525 = sand.u32 %s55, 1
          %s526 = scalar_lea.sflag [#allocation3], %s525
          %s527 = sand.u32 %s55, 1
          %s528 = smul.addr %s527, 4
          %s529 = scalar_lea.vmem [#allocation2], %s528
          %531 = dma.done %s526, 64
        $region40: #{tpu_custom_call.1} parent=35 // pred_fallthru
          _
        // Predicated region
        $region41: #{tpu_custom_call.1} parent=35 // pred_check
          %p532 = pneg %p96
        $region42: #{tpu_custom_call.1} parent=35 // pred_check_branch
          %534 = sbr.rel (%p532) target = $region44
        $region43: #{tpu_custom_call.1} parent=35 // pred_region
          %s535 = sand.u32 %s81, 1
          %s536 = scalar_lea.sflag [#allocation5], %s535
          %s537 = sand.u32 %s81, 1
          %s538 = smul.addr %s537, 4
          %s539 = scalar_lea.vmem [#allocation4], %s538
          %541 = dma.done %s536, 64
        $region44: #{tpu_custom_call.1} parent=35 // pred_fallthru
          _
      $region36: #{tpu_custom_call.1} parent=5 // pred_fallthru
        _
    $region6: #{tpu_custom_call.1} parent=1 // loop_footer
      %s19 = sadd.s32 1, %s15
    $region7: #{tpu_custom_call.1} parent=1 // loop_footer_branch
      %14 = sbr.rel target = $region3
    $region8: #{tpu_custom_call.1} parent=1 // loop_exit
      _
    %542 = vsyncpa [#allocation3], 1
    %s543 = scalar_lea.sflag [#allocation3], 1
    %544 = vsyncpa %s543, 1
    %545 = vsyncpa [#allocation5], 1
    %s546 = scalar_lea.sflag [#allocation5], 1
    %547 = vsyncpa %s546, 1

</llo_original>
